<compile_context>
chip_gen: v5e
topology: v5e:2x2
jax: 0.10.0
libtpu: 0.0.40
codegen_flags: <defaults>
</compile_context>

<pallas_src>
import math

import jax
import jax.numpy as jnp
from jax.experimental import pallas as pl
from jax.experimental.pallas import tpu as pltpu

# MXU input dtype.  Set to jnp.bfloat16 on v5e/v6e/v7x for ~2-4x matmul
# throughput (accumulation stays f32 via preferred_element_type); kept f32
# here so numerics match the f32 PyTorch module.
MXU_DTYPE = jnp.float32

# Explicit scoped-VMEM budget (v7x has only 64 MiB physical VMEM).
VMEM_LIMIT_BYTES = 32 * 1024 * 1024


def _pick_tile(dim, target, align):
    """Largest multiple of `align` that divides `dim` and is <= `target`.
    Falls back to the full dim (always layout-legal) if none exists."""
    if dim <= target:
        return dim
    t = (target // align) * align
    while t >= align:
        if dim % t == 0:
            return t
        t -= align
    return dim


# ---------------------------------------------------------------------------
# Kernel 1: grouped / tiled linear   y[c] = x @ w[c] + b[c]
#   x: (N, K), w: (C, K, F), b: (C, 1, F)  ->  (C, N, F) f32
# ---------------------------------------------------------------------------
def grouped_linear(x, w, b, *, tn_target=256, tf_target=512, tk_target=512):
    N, K = x.shape
    C, _, F = w.shape
    tn = _pick_tile(N, tn_target, 8)      # sublane dim of x / out blocks
    tf = _pick_tile(F, tf_target, 128)    # lane dim of w / b / out blocks
    tk = _pick_tile(K, tk_target, 128)    # lane dim of x block, sublane of w
    grid = (C, N // tn, F // tf, K // tk)
    nk = grid[3]

    def kernel(x_ref, w_ref, b_ref, o_ref, acc_ref):
        k_idx = pl.program_id(3)

        @pl.when(k_idx == 0)
        def _init():
            acc_ref[...] = jnp.zeros_like(acc_ref)

        acc_ref[...] += jnp.dot(
            x_ref[...].astype(MXU_DTYPE),
            w_ref[...].astype(MXU_DTYPE),
            preferred_element_type=jnp.float32)

        @pl.when(k_idx == nk - 1)
        def _finalize():
            o_ref[...] = (acc_ref[...] + b_ref[...]).astype(o_ref.dtype)

    cost = pl.CostEstimate(
        flops=2 * C * N * K * F,
        transcendentals=0,
        bytes_accessed=4 * (C * N * K + C * K * F + C * F + C * N * F))

    return pl.pallas_call(
        kernel,
        out_shape=jax.ShapeDtypeStruct((C, N, F), jnp.float32),
        grid=grid,
        in_specs=[
            pl.BlockSpec((tn, tk), lambda c, i, j, k: (i, k)),
            pl.BlockSpec((None, tk, tf), lambda c, i, j, k: (c, k, j)),
            pl.BlockSpec((None, 1, tf), lambda c, i, j, k: (c, 0, j)),
        ],
        out_specs=pl.BlockSpec((None, tn, tf), lambda c, i, j, k: (c, i, j)),
        scratch_shapes=[pltpu.VMEM((tn, tf), jnp.float32)],
        compiler_params=pltpu.CompilerParams(
            dimension_semantics=("parallel", "parallel", "parallel", "arbitrary"),
            vmem_limit_bytes=VMEM_LIMIT_BYTES),
        cost_estimate=cost,
    )(x, w, b)


# ---------------------------------------------------------------------------
# Kernel 2: flash-style multi-head attention.
#   q4/k4/v4 are rank-4 (C, B, Seq, E) buffers; (qc, kc, vc) pick the leading
#   slot that holds q / k / v.  For self-attention all three are the SAME
#   fused (3, B, L, E) projection output (q/k/v split done by index_map).
#   Returns the context as (B, Lq, E) (lane-dense, heads packed along E).
# ---------------------------------------------------------------------------
def flash_attention(q4, k4, v4, qc, kc, vc, *, num_heads, scale_inv,
                    tq_target=256, tkv_target=512):
    _, B, Lq, E = q4.shape
    S = k4.shape[2]
    D = E // num_heads
    tq = _pick_tile(Lq, tq_target, 8)
    tkv = _pick_tile(S, tkv_target, 8)
    grid = (B, Lq // tq, S // tkv)
    nkv = grid[2]

    def kernel(q_ref, k_ref, v_ref, o_ref, m_ref, l_ref, acc_ref):
        j = pl.program_id(2)

        @pl.when(j == 0)
        def _init():
            m_ref[...] = jnp.full(m_ref.shape, -jnp.inf, m_ref.dtype)
            l_ref[...] = jnp.zeros(l_ref.shape, l_ref.dtype)
            acc_ref[...] = jnp.zeros(acc_ref.shape, acc_ref.dtype)

        q_all = q_ref[...]          # (tq, E)   all heads, lane-dense
        k_all = k_ref[...]          # (tkv, E)
        v_all = v_ref[...]          # (tkv, E)

        # TODO(synk): for tiny head_dim, pack multiple heads per MXU pass so
        # the contraction dimension reaches >= 128 (D=8 underuses the MXU).
        for h in range(num_heads):                              # static unroll
            cs = slice(h * D, (h + 1) * D)
            q_h = (q_all[:, cs] * scale_inv).astype(MXU_DTYPE)  # pre-scaled q
            k_h = k_all[:, cs].astype(MXU_DTYPE)
            v_h = v_all[:, cs].astype(MXU_DTYPE)

            s = jax.lax.dot_general(                            # q_h @ k_h^T
                q_h, k_h, (((1,), (1,)), ((), ())),
                preferred_element_type=jnp.float32)             # (tq, tkv)

            m_prev = m_ref[:, h:h + 1]                          # (tq, 1)
            l_prev = l_ref[:, h:h + 1]
            m_new = jnp.maximum(m_prev, jnp.max(s, axis=-1, keepdims=True))
            alpha = jnp.exp(m_prev - m_new)
            p = jnp.exp(s - m_new)                              # (tq, tkv)
            l_new = alpha * l_prev + jnp.sum(p, axis=-1, keepdims=True)
            pv = jnp.dot(p.astype(MXU_DTYPE), v_h,
                         preferred_element_type=jnp.float32)    # (tq, D)
            acc_ref[:, cs] = alpha * acc_ref[:, cs] + pv
            m_ref[:, h:h + 1] = m_new
            l_ref[:, h:h + 1] = l_new

        @pl.when(j == nkv - 1)
        def _finalize():
            for h in range(num_heads):
                cs = slice(h * D, (h + 1) * D)
                inv_l = pl.reciprocal(l_ref[:, h:h + 1], approx=True)  # EUP
                o_ref[:, cs] = (acc_ref[:, cs] * inv_l).astype(o_ref.dtype)

    cost = pl.CostEstimate(
        flops=4 * B * num_heads * Lq * S * D,
        transcendentals=B * num_heads * Lq * S,
        bytes_accessed=4 * (2 * B * Lq * E + 2 * B * S * E))

    return pl.pallas_call(
        kernel,
        out_shape=jax.ShapeDtypeStruct((B, Lq, E), jnp.float32),
        grid=grid,
        in_specs=[
            pl.BlockSpec((None, None, tq, E), lambda b, i, j: (qc, b, i, 0)),
            pl.BlockSpec((None, None, tkv, E), lambda b, i, j: (kc, b, j, 0)),
            pl.BlockSpec((None, None, tkv, E), lambda b, i, j: (vc, b, j, 0)),
        ],
        out_specs=pl.BlockSpec((None, tq, E), lambda b, i, j: (b, i, 0)),
        scratch_shapes=[
            pltpu.VMEM((tq, num_heads), jnp.float32),   # running max, per head
            pltpu.VMEM((tq, num_heads), jnp.float32),   # running sum, per head
            pltpu.VMEM((tq, E), jnp.float32),           # lane-dense accumulator
        ],
        compiler_params=pltpu.CompilerParams(
            dimension_semantics=("parallel", "parallel", "arbitrary"),
            vmem_limit_bytes=VMEM_LIMIT_BYTES),
        cost_estimate=cost,
    )(q4, k4, v4)


# ---------------------------------------------------------------------------
# MHA forward (matches the PyTorch module's default path: no masks,
# dropout p = 0.0 (identity), need_weights = False).
# ---------------------------------------------------------------------------
def mha_forward(query, key, value, params, num_heads):
    """query: (L, B, E), key/value: (S, B, E) f32.  Returns ((L, B, E), None)."""
    L, B, E = query.shape
    S = key.shape[0]
    H = num_heads
    D = E // H
    scale_inv = 1.0 / math.sqrt(D)

    w3, b3 = params["in_proj_w3"], params["in_proj_b3"]        # (3,E,E), (3,1,E)
    w_o, b_o = params["out_proj_w1"], params["out_proj_b1"]    # (1,E,E), (1,1,E)

    # Batch-major token rows: one transpose in, one transpose out (replaces the
    # four per-tensor q/k/v/ctx transposes of the naive layout).
    q_rows = query.transpose(1, 0, 2).reshape(B * L, E)

    if query is key and key is value:
        # Fused self-attention projection: one kernel launch with C=3; the
        # attention kernel then splits q/k/v purely via index_map offsets.
        qkv = grouped_linear(q_rows, w3, b3).reshape(3, B, L, E)
        q4 = k4 = v4 = qkv
        qc, kc, vc = 0, 1, 2
    else:
        # Cross-attention: separate projections.  Mathematically identical to
        # the fused path when query == key == value, so this fork only changes
        # the number of kernel launches, never the result.
        k_rows = key.transpose(1, 0, 2).reshape(B * S, E)
        v_rows = value.transpose(1, 0, 2).reshape(B * S, E)
        q4 = grouped_linear(q_rows, w3[0:1], b3[0:1]).reshape(1, B, L, E)
        k4 = grouped_linear(k_rows, w3[1:2], b3[1:2]).reshape(1, B, S, E)
        v4 = grouped_linear(v_rows, w3[2:3], b3[2:3]).reshape(1, B, S, E)
        qc = kc = vc = 0

    # TODO(synk): attn_mask / key_padding_mask (None in this config) would be
    # added as masked bias terms on `s` inside the flash kernel.
    ctx = flash_attention(q4, k4, v4, qc, kc, vc,
                          num_heads=H, scale_inv=scale_inv)     # (B, L, E)

    out = grouped_linear(ctx.reshape(B * L, E), w_o, b_o)       # (1, B*L, E)
    out = out.reshape(B, L, E).transpose(1, 0, 2)               # (L, B, E)
    return out, None


# ---------------------------------------------------------------------------
# Deterministic synthetic parameters (nn.Linear-style), pre-arranged once:
#   y = x @ w3[c] + b3[c]  with  w3[c] = W_in[c*E:(c+1)*E, :].T
# ---------------------------------------------------------------------------
def init_params(key, embed_dim):
    E = embed_dim
    k1, k2, k3, k4 = jax.random.split(key, 4)
    lim = 1.0 / math.sqrt(E)
    w_in = jax.random.uniform(k1, (3 * E, E), jnp.float32, -lim, lim)
    b_in = jax.random.uniform(k2, (3 * E,), jnp.float32, -lim, lim)
    w_out = jax.random.uniform(k3, (E, E), jnp.float32, -lim, lim)
    b_out = jax.random.uniform(k4, (E,), jnp.float32, -lim, lim)
    return {
        "in_proj_w3": jnp.transpose(w_in.reshape(3, E, E), (0, 2, 1)),
        "in_proj_b3": b_in.reshape(3, 1, E),
        "out_proj_w1": w_out.T[None],
        "out_proj_b1": b_out.reshape(1, 1, E),
    }


# ---------------------------------------------------------------------------
# Pure-JAX reference for sanity checking.
# ---------------------------------------------------------------------------
def mha_reference(query, key, value, params, num_heads):
    L, B, E = query.shape
    S = key.shape[0]
    H = num_heads
    D = E // H
    w3, b3 = params["in_proj_w3"], params["in_proj_b3"]
    q = query @ w3[0] + b3[0, 0]
    k = key @ w3[1] + b3[1, 0]
    v = value @ w3[2] + b3[2, 0]
    q = q.reshape(L, B, H, D).transpose(1, 2, 0, 3)
    k = k.reshape(S, B, H, D).transpose(1, 2, 0, 3)
    v = v.reshape(S, B, H, D).transpose(1, 2, 0, 3)
    s = jnp.einsum("bhld,bhsd->bhls", q, k) / math.sqrt(D)
    w = jax.nn.softmax(s, axis=-1)
    ctx = jnp.einsum("bhls,bhsd->bhld", w, v)
    ctx = ctx.transpose(2, 0, 1, 3).reshape(L, B, E)
    return ctx @ params["out_proj_w1"][0] + params["out_proj_b1"][0, 0]


if __name__ == "__main__":
    # Small shapes consistent with the module: L=8, B=2, E=32, H=4 (D=8).
    L, B, E, H = 8, 2, 32, 4
    S = 16  # distinct source length for the cross-attention check

    key0 = jax.random.PRNGKey(0)
    kx, ky, kp = jax.random.split(key0, 3)
    x = jax.random.normal(kx, (L, B, E), dtype=jnp.float32)
    params = init_params(kp, E)

    # Self-attention path (query is key is value -> fused C=3 projection).
    out, attn_w = mha_forward(x, x, x, params, num_heads=H)
    out = jax.block_until_ready(out)
    ref = mha_reference(x, x, x, params, H)
    assert out.shape == (L, B, E)
    assert attn_w is None
    assert jnp.allclose(out, ref, atol=5e-3, rtol=5e-3), "self-attn mismatch"

    # Cross-attention path (distinct memory, S != L -> separate projections).
    mem = jax.random.normal(ky, (S, B, E), dtype=jnp.float32)
    out2, _ = mha_forward(x, mem, mem, params, num_heads=H)
    out2 = jax.block_until_ready(out2)
    ref2 = mha_reference(x, mem, mem, params, H)
    assert jnp.allclose(out2, ref2, atol=5e-3, rtol=5e-3), "cross-attn mismatch"

    print("KERNEL_OK")
</pallas_src>

<mosaic_0001>
module attributes {stable_mosaic.version = 11 : i64} {
  func.func @kernel(%arg0: i32, %arg1: i32, %arg2: i32, %arg3: i32, %arg4: memref<16x32xf32, #tpu.memory_space<vmem>>, %arg5: memref<1x32x32xf32, #tpu.memory_space<vmem>>, %arg6: memref<1x1x32xf32, #tpu.memory_space<vmem>>, %arg7: memref<1x16x32xf32, #tpu.memory_space<vmem>>, %arg8: memref<16x32xf32, #tpu.memory_space<vmem>>) attributes {dimension_semantics = [#tpu.dimension_semantics<parallel>, #tpu.dimension_semantics<parallel>, #tpu.dimension_semantics<parallel>, #tpu.dimension_semantics<arbitrary>], iteration_bounds = array<i64: 3, 1, 1, 1>, scalar_prefetch = 0 : i64, scratch_operands = 1 : i64, tpu.core_type = #tpu.core_type<tc>, window_params = [{transform_indices = @transform_0, window_bounds = array<i64: 16, 32>}, {transform_indices = @transform_1, window_bounds = array<i64: 1, 32, 32>}, {transform_indices = @transform_2, window_bounds = array<i64: 1, 1, 32>}, {transform_indices = @transform_3, window_bounds = array<i64: 1, 16, 32>}]} {
    %c0_i32 = arith.constant 0 : i32
    %0 = arith.cmpi eq, %arg3, %c0_i32 : i32
    %1 = arith.extui %0 : i1 to i32
    %c0_i32_0 = arith.constant 0 : i32
    %2 = arith.cmpi ne, %1, %c0_i32_0 : i32
    scf.if %2 {
      %cst_11 = arith.constant 0.000000e+00 : f32
      %13 = vector.broadcast %cst_11 : f32 to vector<16x32xf32>
      %c0_12 = arith.constant 0 : index
      %c0_13 = arith.constant 0 : index
      %14 = vector.load %arg8[%c0_12, %c0_13] : memref<16x32xf32, #tpu.memory_space<vmem>>, vector<16x32xf32>
      tpu.vector_store %arg8[%c0_12, %c0_13], %13 {strides = array<i32>} : memref<16x32xf32, #tpu.memory_space<vmem>>, vector<16x32xf32>,
    } else {
    }
    %c0 = arith.constant 0 : index
    %c0_1 = arith.constant 0 : index
    %3 = vector.load %arg8[%c0, %c0_1] : memref<16x32xf32, #tpu.memory_space<vmem>>, vector<16x32xf32>
    %c0_2 = arith.constant 0 : index
    %c0_3 = arith.constant 0 : index
    %4 = vector.load %arg4[%c0_2, %c0_3] : memref<16x32xf32, #tpu.memory_space<vmem>>, vector<16x32xf32>
    %c0_4 = arith.constant 0 : index
    %c0_5 = arith.constant 0 : index
    %c0_6 = arith.constant 0 : index
    %5 = vector.load %arg5[%c0_4, %c0_5, %c0_6] : memref<1x32x32xf32, #tpu.memory_space<vmem>>, vector<1x32x32xf32>
    %6 = vector.shape_cast %5 : vector<1x32x32xf32> to vector<32x32xf32>
    %cst = arith.constant dense<0.000000e+00> : vector<16x32xf32>
    %7 = tpu.matmul %4, %6, %cst {dimension_numbers = #tpu.dot_dimension_numbers<[1], [0], [0], [1], [0, 0, 1, 1], [], []>} : vector<16x32xf32>, vector<32x32xf32>, vector<16x32xf32> -> vector<16x32xf32>
    %8 = arith.addf %3, %7 : vector<16x32xf32>
    %c0_7 = arith.constant 0 : index
    %c0_8 = arith.constant 0 : index
    %9 = vector.load %arg8[%c0_7, %c0_8] : memref<16x32xf32, #tpu.memory_space<vmem>>, vector<16x32xf32>
    tpu.vector_store %arg8[%c0_7, %c0_8], %8 {strides = array<i32>} : memref<16x32xf32, #tpu.memory_space<vmem>>, vector<16x32xf32>,
    %c0_i32_9 = arith.constant 0 : i32
    %10 = arith.cmpi eq, %arg3, %c0_i32_9 : i32
    %11 = arith.extui %10 : i1 to i32
    %c0_i32_10 = arith.constant 0 : i32
    %12 = arith.cmpi ne, %11, %c0_i32_10 : i32
    scf.if %12 {
      %c0_11 = arith.constant 0 : index
      %c0_12 = arith.constant 0 : index
      %13 = vector.load %arg8[%c0_11, %c0_12] : memref<16x32xf32, #tpu.memory_space<vmem>>, vector<16x32xf32>
      %c0_13 = arith.constant 0 : index
      %c0_14 = arith.constant 0 : index
      %c0_15 = arith.constant 0 : index
      %14 = vector.load %arg6[%c0_13, %c0_14, %c0_15] : memref<1x1x32xf32, #tpu.memory_space<vmem>>, vector<1x1x32xf32>
      %15 = vector.shape_cast %14 : vector<1x1x32xf32> to vector<1x32xf32>
      %16 = vector.broadcast %15 : vector<1x32xf32> to vector<16x32xf32>
      %17 = arith.addf %13, %16 : vector<16x32xf32>
      %c0_16 = arith.constant 0 : index
      %c0_17 = arith.constant 0 : index
      %c0_18 = arith.constant 0 : index
      %18 = vector.load %arg7[%c0_16, %c0_17, %c0_18] : memref<1x16x32xf32, #tpu.memory_space<vmem>>, vector<1x16x32xf32>
      %19 = vector.shape_cast %18 : vector<1x16x32xf32> to vector<16x32xf32>
      %20 = vector.shape_cast %17 : vector<16x32xf32> to vector<1x16x32xf32>
      tpu.vector_store %arg7[%c0_16, %c0_17, %c0_18], %20 {strides = array<i32>} : memref<1x16x32xf32, #tpu.memory_space<vmem>>, vector<1x16x32xf32>,
    } else {
    }
    return
  }
  func.func @transform_0(%arg0: i32, %arg1: i32, %arg2: i32, %arg3: i32) -> (i32, i32) {
    %c0_i32 = arith.constant 0 : i32
    return %arg1, %arg3 : i32, i32
  }
  func.func @transform_1(%arg0: i32, %arg1: i32, %arg2: i32, %arg3: i32) -> (i32, i32, i32) {
    %c0_i32 = arith.constant 0 : i32
    return %arg0, %arg3, %arg2 : i32, i32, i32
  }
  func.func @transform_2(%arg0: i32, %arg1: i32, %arg2: i32, %arg3: i32) -> (i32, i32, i32) {
    %c0_i32 = arith.constant 0 : i32
    %c0_i32_0 = arith.constant 0 : i32
    return %arg0, %c0_i32, %arg2 : i32, i32, i32
  }
  func.func @transform_3(%arg0: i32, %arg1: i32, %arg2: i32, %arg3: i32) -> (i32, i32, i32) {
    %c0_i32 = arith.constant 0 : i32
    return %arg0, %arg1, %arg2 : i32, i32, i32
  }
}

</mosaic_0001>

<llo_original>
// kernel: tpu_custom_call.1
$region0: #{tpu_custom_call.1}
  #allocation0 [shape = 'u32[]', space=smem, size = 0x4, offset = 0x4, fixed_abs, tag = 'smem constant byte address 0x4 - core index']
  #allocation1 [shape = 'u32[72,128]{1,0:T(1,128)}', space=vmem, size = 0x9000, scoped, tag = 'internal scratch']
  #allocation2 [shape = 'f32[16,32]{1,0:T(8,128)}', space=vmem, size = 0x2000, scoped, tag = 'scratch operand']
  %s0 = inlined_call_operand.hbm [shape: f32[16,32], index: 0, kind: input, shape index: {}]
  %s1 = inlined_call_operand.hbm [shape: f32[3,32,32], index: 1, kind: input, shape index: {}]
  %s2 = inlined_call_operand.hbm [shape: f32[3,1,32], index: 2, kind: input, shape index: {}]
  %s3 = inlined_call_operand.hbm [shape: f32[3,16,32], index: 3, kind: output, shape index: {}]
  %s4 = sld [smem:[#allocation0]]
  $region65: #{tpu_custom_call.1} parent=0
    _
  %s6 = ssub.s32 1, %s4
  %s7 = scalar_select 0, %s6, %s4
  $region1: #{tpu_custom_call.1} parent=0
    #allocation3 [shape = 'u8[8192]{0}', space=vmem, size = 0x2000, scoped, tag = 'input window, operand 0, single buffered']
    #allocation4 [shape = 's32[2]{0}', space=sflag, size = 0x8, scoped, tag = 'scoped memory for tpu_custom_call.1']
    #allocation5 [shape = 's32[2]{0}', space=sflag, size = 0x8, scoped, tag = 'scoped memory for tpu_custom_call.1']
    #allocation6 [shape = 'u8[32768]{0}', space=vmem, size = 0x8000, scoped, tag = 'input window, operand 1']
    #allocation7 [shape = 's32[2]{0}', space=sflag, size = 0x8, scoped, tag = 'scoped memory for tpu_custom_call.1']
    #allocation8 [shape = 'u8[1024]{0}', space=vmem, size = 0x400, scoped, tag = 'input window, operand 2']
    #allocation9 [shape = 'u8[16384]{0}', space=vmem, size = 0x4000, scoped, tag = 'output window, operand 0']
    %8 = vsyncpa [#allocation4], 0
    %9 = vsyncpa [#allocation7], 0
    %s10 = scalar_lea.sflag [#allocation7], 1
    %11 = vsyncpa %s10, 0
    %12 = vsyncpa [#allocation5], 0
    %s13 = scalar_lea.sflag [#allocation5], 1
    %14 = vsyncpa %s13, 0
    loop: start=0, step=1, limit=5
    $region2: #{tpu_custom_call.1} parent=1 // loop_pre_header
      _
    $region3: #{tpu_custom_call.1} parent=1 // loop_header
      %s16 = sphi 0, %s20
      %p17 = scmp.ge.s32.totalorder %s16, 5
      %s23 = sphi 0, %s49
      %s24 = sphi 0, %s45
      %s25 = sphi 0, %s41
      %s26 = sphi 0, %s37
      %s27 = sphi 0, %s23
      %s28 = sphi 0, %s24
      %s29 = sphi 0, %s25
      %s30 = sphi 0, %s26
      %s31 = sphi 0, %s27
      %s32 = sphi 0, %s28
      %s33 = sphi 0, %s29
      %s34 = sphi 0, %s30
      %s54 = sphi 0, %s56
      %s57 = sphi 0, %s54
      %s58 = sphi 0, %s57
      %s74 = sphi 0, %s58
      %s84 = sphi 0, %s86
      %s87 = sphi 0, %s84
      %s88 = sphi 0, %s87
      %s104 = sphi 0, %s88
      %s112 = sphi 0, %s114
      %s115 = sphi 0, %s112
      %s116 = sphi 0, %s115
      %s132 = sphi 0, %s116
      %s142 = sphi 0, %s144
      %s145 = sphi 0, %s142
      %s146 = sphi 0, %s145
      %s162 = sphi 0, %s146
    $region4: #{tpu_custom_call.1} parent=1 // loop_header_branch
      %19 = sbr.rel (%p17) target = $region8
    $region5: #{tpu_custom_call.1} parent=1 // loop_body
      %s21 = ssub.s32 %s16, 1
      %s22 = ssub.s32 %s16, 2
      %s35 = sadd.s32 1, %s26
      %p36 = scmp.ge.s32.totalorder %s35, 1
      %s37 = scalar_select %p36, 0, %s35
      %s38 = sadd.s32 1, %s25
      %s39 = scalar_select %p36, %s38, %s25
      %p40 = scmp.ge.s32.totalorder %s39, 1
      %s41 = scalar_select %p40, 0, %s39
      %s42 = sadd.s32 1, %s24
      %s43 = scalar_select %p40, %s42, %s24
      %p44 = scmp.ge.s32.totalorder %s43, 1
      %s45 = scalar_select %p44, 0, %s43
      %s46 = sadd.s32 1, %s23
      %s47 = scalar_select %p44, %s46, %s23
      %p48 = scmp.ge.s32.totalorder %s47, 3
      %s49 = scalar_select %p48, 0, %s47
      %s50 = ssub.s32 %s24, %s45
      %s51 = ssub.s32 %s26, %s37
      %s52 = sor.u32 %s50, %s51
      %p53 = scmp.eq.s32.totalorder %s52, 0
      %s55 = sadd.s32 %s54, 1
      %s56 = scalar_select %p53, %s54, %s55
      %p59 = pneg %p53
      %p60 = scmp.eq.s32.totalorder %s16, 2
      %p61 = por %p59, %p60
      %p62 = scmp.ne.s32.totalorder %s54, %s57
      %p63 = scmp.eq.s32.totalorder %s16, 0
      %p64 = por %p62, %p63
      %p65 = scmp.ne.s32.totalorder %s54, %s57
      %p66 = scmp.eq.s32.totalorder %s21, 2
      %p67 = por %p65, %p66
      %p68 = scmp.ne.s32.totalorder %s57, %s58
      %p69 = scmp.eq.s32.totalorder %s21, 0
      %p70 = por %p68, %p69
      %p71 = scmp.ne.s32.totalorder %s57, %s58
      %p72 = scmp.eq.s32.totalorder %s22, 2
      %p73 = por %p71, %p72
      %p75 = scmp.ne.s32.totalorder %s58, %s74
      %p76 = scmp.eq.s32.totalorder %s22, 0
      %p77 = por %p75, %p76
      %s78 = ssub.s32 %s23, %s49
      %s79 = ssub.s32 %s26, %s37
      %s80 = sor.u32 %s78, %s79
      %s81 = ssub.s32 %s25, %s41
      %s82 = sor.u32 %s80, %s81
      %p83 = scmp.eq.s32.totalorder %s82, 0
      %s85 = sadd.s32 %s84, 1
      %s86 = scalar_select %p83, %s84, %s85
      %p89 = pneg %p83
      %p90 = scmp.eq.s32.totalorder %s16, 2
      %p91 = por %p89, %p90
      %p92 = scmp.ne.s32.totalorder %s84, %s87
      %p93 = scmp.eq.s32.totalorder %s16, 0
      %p94 = por %p92, %p93
      %p95 = scmp.ne.s32.totalorder %s84, %s87
      %p96 = scmp.eq.s32.totalorder %s21, 2
      %p97 = por %p95, %p96
      %p98 = scmp.ne.s32.totalorder %s87, %s88
      %p99 = scmp.eq.s32.totalorder %s21, 0
      %p100 = por %p98, %p99
      %p101 = scmp.ne.s32.totalorder %s87, %s88
      %p102 = scmp.eq.s32.totalorder %s22, 2
      %p103 = por %p101, %p102
      %p105 = scmp.ne.s32.totalorder %s88, %s104
      %p106 = scmp.eq.s32.totalorder %s22, 0
      %p107 = por %p105, %p106
      %s108 = ssub.s32 %s23, %s49
      %s109 = ssub.s32 %s25, %s41
      %s110 = sor.u32 %s108, %s109
      %p111 = scmp.eq.s32.totalorder %s110, 0
      %s113 = sadd.s32 %s112, 1
      %s114 = scalar_select %p111, %s112, %s113
      %p117 = pneg %p111
      %p118 = scmp.eq.s32.totalorder %s16, 2
      %p119 = por %p117, %p118
      %p120 = scmp.ne.s32.totalorder %s112, %s115
      %p121 = scmp.eq.s32.totalorder %s16, 0
      %p122 = por %p120, %p121
      %p123 = scmp.ne.s32.totalorder %s112, %s115
      %p124 = scmp.eq.s32.totalorder %s21, 2
      %p125 = por %p123, %p124
      %p126 = scmp.ne.s32.totalorder %s115, %s116
      %p127 = scmp.eq.s32.totalorder %s21, 0
      %p128 = por %p126, %p127
      %p129 = scmp.ne.s32.totalorder %s115, %s116
      %p130 = scmp.eq.s32.totalorder %s22, 2
      %p131 = por %p129, %p130
      %p133 = scmp.ne.s32.totalorder %s116, %s132
      %p134 = scmp.eq.s32.totalorder %s22, 0
      %p135 = por %p133, %p134
      %s136 = ssub.s32 %s23, %s49
      %s137 = ssub.s32 %s24, %s45
      %s138 = sor.u32 %s136, %s137
      %s139 = ssub.s32 %s25, %s41
      %s140 = sor.u32 %s138, %s139
      %p141 = scmp.eq.s32.totalorder %s140, 0
      %s143 = sadd.s32 %s142, 1
      %s144 = scalar_select %p141, %s142, %s143
      %p147 = pneg %p141
      %p148 = scmp.eq.s32.totalorder %s16, 2
      %p149 = por %p147, %p148
      %p150 = scmp.ne.s32.totalorder %s142, %s145
      %p151 = scmp.eq.s32.totalorder %s16, 0
      %p152 = por %p150, %p151
      %p153 = scmp.ne.s32.totalorder %s142, %s145
      %p154 = scmp.eq.s32.totalorder %s21, 2
      %p155 = por %p153, %p154
      %p156 = scmp.ne.s32.totalorder %s145, %s146
      %p157 = scmp.eq.s32.totalorder %s21, 0
      %p158 = por %p156, %p157
      %p159 = scmp.ne.s32.totalorder %s145, %s146
      %p160 = scmp.eq.s32.totalorder %s22, 2
      %p161 = por %p159, %p160
      %p163 = scmp.ne.s32.totalorder %s146, %s162
      %p164 = scmp.eq.s32.totalorder %s22, 0
      %p165 = por %p163, %p164
      %p166 = scmp.le.s32.totalorder 1, %s16
      %p167 = scmp.lt.s32.totalorder %s16, 4
      %p168 = pnand %p166, %p167
      %p169 = pneg %p168
      // Predicated region
      $region9: #{tpu_custom_call.1} parent=5 // pred_check
        _
      $region10: #{tpu_custom_call.1} parent=5 // pred_check_branch
        %171 = sbr.rel (%p168) target = $region12
      $region11: #{tpu_custom_call.1} parent=5 // pred_region
        %s172 = ssub.s32 %s16, 1
        // Predicated region
        $region13: #{tpu_custom_call.1} parent=11 // pred_check
          %p173 = pneg %p70
        $region14: #{tpu_custom_call.1} parent=11 // pred_check_branch
          %175 = sbr.rel (%p173) target = $region16
        $region15: #{tpu_custom_call.1} parent=11 // pred_region
          %s176 = smul.u32 2, %s28
          %178 = vsyncadd [#allocation4], 0
          %s179 = sadd.s32 %s30, %s176
          %s180 = smul.addr %s179, 8
          %s181 = scalar_lea.hbm %s0, %s180
          %s182 = sshll.u32 %s181, 4
          %s183 = int_to_ptr.hbm [resolvable:$true] %s182
          %s184 = sshll.u32 [#allocation3], 4
          %s185 = int_to_ptr.vmem [resolvable:$true] %s184
          %190 = dma.hbm_to_vmem [thread:$0]  %s183, 256, %s185, [#allocation4], 128, 128, 8
        $region16: #{tpu_custom_call.1} parent=11 // pred_fallthru
          _
      $region12: #{tpu_custom_call.1} parent=5 // pred_fallthru
        _
      %p191 = scmp.lt.s32.totalorder %s16, 3
      // Predicated region
      $region17: #{tpu_custom_call.1} parent=5 // pred_check
        %p192 = pneg %p191
      $region18: #{tpu_custom_call.1} parent=5 // pred_check_branch
        %194 = sbr.rel (%p192) target = $region20
      $region19: #{tpu_custom_call.1} parent=5 // pred_region
        // Predicated region
        $region21: #{tpu_custom_call.1} parent=19 // pred_check
          %p195 = pneg %p94
        $region22: #{tpu_custom_call.1} parent=19 // pred_check_branch
          %197 = sbr.rel (%p195) target = $region24
        $region23: #{tpu_custom_call.1} parent=19 // pred_region
          %s198 = sand.u32 %s16, 1
          %s199 = scalar_lea.sflag [#allocation7], %s198
          %s200 = sand.u32 %s84, 1
          %s201 = smul.addr %s200, 32
          %s202 = scalar_lea.vmem [#allocation6], %s201
          %s203 = smul.u32 4, %s26
          %205 = vsyncadd %s199, 0
          %s206 = sadd.s32 %s25, %s203
          %s207 = smul.addr %s23, 4
          %s208 = sadd.s32 %s206, %s207
          %s209 = smul.addr %s208, 8
          %s210 = scalar_lea.hbm %s1, %s209
          %s211 = sshll.u32 %s210, 4
          %s212 = int_to_ptr.hbm [resolvable:$true] %s211
          %s213 = sshll.u32 %s202, 4
          %s214 = int_to_ptr.vmem [resolvable:$true] %s213
          %219 = dma.hbm_to_vmem [thread:$0]  %s212, 512, %s214, %s199, 128, 128, 8
        $region24: #{tpu_custom_call.1} parent=19 // pred_fallthru
          _
        // Predicated region
        $region25: #{tpu_custom_call.1} parent=19 // pred_check
          %p220 = pneg %p122
        $region26: #{tpu_custom_call.1} parent=19 // pred_check_branch
          %222 = sbr.rel (%p220) target = $region28
        $region27: #{tpu_custom_call.1} parent=19 // pred_region
          %s223 = sand.u32 %s16, 1
          %s224 = scalar_lea.sflag [#allocation7], %s223
          %s225 = sand.u32 %s112, 1
          %s226 = scalar_lea.vmem [#allocation8], %s225
          %228 = vsyncadd %s224, 0
          %s229 = sadd.s32 %s25, %s23
          %s230 = scalar_lea.hbm %s2, %s229
          %s232 = sshll.u32 %s230, 4
          %s233 = int_to_ptr.hbm [resolvable:$true] %s232
          %s234 = sshll.u32 %s226, 4
          %s235 = int_to_ptr.vmem [resolvable:$true] %s234
          %237 = dma.hbm_to_vmem [thread:$0]  %s233, 16, %s235, %s224
        $region28: #{tpu_custom_call.1} parent=19 // pred_fallthru
          _
      $region20: #{tpu_custom_call.1} parent=5 // pred_fallthru
        _
      %p238 = scmp.le.s32.totalorder 1, %s16
      %p239 = scmp.lt.s32.totalorder %s16, 4
      %p240 = pnand %p238, %p239
      %p241 = pneg %p240
      // Predicated region
      $region29: #{tpu_custom_call.1} parent=5 // pred_check
        _
      $region30: #{tpu_custom_call.1} parent=5 // pred_check_branch
        %243 = sbr.rel (%p240) target = $region32
      $region31: #{tpu_custom_call.1} parent=5 // pred_region
        %s244 = ssub.s32 %s16, 1
        // Predicated region
        $region33: #{tpu_custom_call.1} parent=31 // pred_check
          %p245 = pneg %p70
        $region34: #{tpu_custom_call.1} parent=31 // pred_check_branch
          %247 = sbr.rel (%p245) target = $region36
        $region35: #{tpu_custom_call.1} parent=31 // pred_region
          %249 = dma.done [#allocation4], 256
        $region36: #{tpu_custom_call.1} parent=31 // pred_fallthru
          _
        %s250 = sand.u32 %s21, 1
        %s251 = scalar_lea.sflag [#allocation7], %s250
        %s252 = sand.u32 %s87, 1
        %s253 = smul.addr %s252, 32
        %s254 = scalar_lea.vmem [#allocation6], %s253
        // Predicated region
        $region37: #{tpu_custom_call.1} parent=31 // pred_check
          %p255 = pneg %p100
        $region38: #{tpu_custom_call.1} parent=31 // pred_check_branch
          %257 = sbr.rel (%p255) target = $region40
        $region39: #{tpu_custom_call.1} parent=31 // pred_region
          %259 = dma.done %s251, 512
        $region40: #{tpu_custom_call.1} parent=31 // pred_fallthru
          _
        %s260 = sand.u32 %s21, 1
        %s261 = scalar_lea.sflag [#allocation7], %s260
        %s262 = sand.u32 %s115, 1
        %s263 = scalar_lea.vmem [#allocation8], %s262
        // Predicated region
        $region41: #{tpu_custom_call.1} parent=31 // pred_check
          %p264 = pneg %p128
        $region42: #{tpu_custom_call.1} parent=31 // pred_check_branch
          %266 = sbr.rel (%p264) target = $region44
        $region43: #{tpu_custom_call.1} parent=31 // pred_region
          %268 = dma.done %s261, 16
        $region44: #{tpu_custom_call.1} parent=31 // pred_fallthru
          _
        %p269 = pneg %p70
        %p270 = pneg %p67
        %s271 = sand.u32 %s21, 1
        %s272 = scalar_lea.sflag [#allocation7], %s271
        %s273 = sand.u32 %s87, 1
        %s274 = smul.addr %s273, 32
        %s275 = scalar_lea.vmem [#allocation6], %s274
        %p276 = pneg %p100
        %p277 = pneg %p97
        %s278 = sand.u32 %s21, 1
        %s279 = scalar_lea.sflag [#allocation7], %s278
        %s280 = sand.u32 %s115, 1
        %s281 = scalar_lea.vmem [#allocation8], %s280
        %p282 = pneg %p128
        %p283 = pneg %p125
        %p284 = pneg %p158
        %p285 = pneg %p155
        %s286 = sand.u32 %s145, 1
        %s287 = scalar_lea.sflag [#allocation5], %s286
        %s288 = sand.u32 %s145, 1
        %s289 = smul.addr %s288, 16
        %s290 = scalar_lea.vmem [#allocation9], %s289
        %s291 = smul.u32 2, %s28
        %s292 = smul.u32 4, %s30
        %s293 = smul.u32 2, %s28
        %p294 = scmp.eq.s32.totalorder %s30, 0
        // Predicated region
        $region45: #{tpu_custom_call.1} parent=31 // pred_check
          %p295 = pneg %p294
        $region46: #{tpu_custom_call.1} parent=31 // pred_check_branch
          %297 = sbr.rel (%p295) target = $region48
        $region47: #{tpu_custom_call.1} parent=31 // pred_region
          %vm298 = vcmask 261120
          %299 = vst.msk [vmem:[#allocation2] sm:$0xff] %vm298, 0.0
          %300 = vst.msk [vmem:[#allocation2 + $0x8] sm:$0xff] %vm298, 0.0
        $region48: #{tpu_custom_call.1} parent=31 // pred_fallthru
          _
        %v301 = vld [vmem:[#allocation2] sm:$0xff]
        %v302 = vld [vmem:[#allocation2 + $0x8] sm:$0xff]
        %v303 = vld [vmem:[#allocation3] sm:$0xff]
        %v304 = vld [vmem:[#allocation3 + $0x8] sm:$0xff]
        %v305 = vld [vmem:[%s254] sm:$0xff]
        %v306 = vld [vmem:[%s254 + $0x8] sm:$0xff]
        %v307 = vld [vmem:[%s254 + $0x10] sm:$0xff]
        %v308 = vld [vmem:[%s254 + $0x18] sm:$0xff]
        %vm309 = vcmask 261120
        %v311 = vsel %vm309, %v303, 0
        %v314 = vsel %vm309, %v304, 0
        %316 = vmatpush.msra.mxu0 0.0
        %317 = vmatpush.msra.mxu0 0.0
        %318 = vmatpush.msra.mxu0 0.0
        %319 = vmatpush.msra.mxu0 0.0
        %320 = vmatpush.msra.mxu0 0.0
        %321 = vmatpush.msra.mxu0 0.0
        %322 = vmatpush.msra.mxu0 0.0
        %323 = vmatpush.msra.mxu0 0.0
        %324 = vmatpush.msra.mxu0 0.0
        %325 = vmatpush.msra.mxu0 0.0
        %326 = vmatpush.msra.mxu0 0.0
        %327 = vmatpush.msra.mxu0 0.0
        %328 = vmatpush.msra.mxu0 %v308
        %329 = vmatpush.msra.mxu0 %v307
        %330 = vmatpush.msra.mxu0 %v306
        %331 = vmatpush.msra.mxu0 %v305
        %332 = vmatmul.f32.gmra.mxu0 %v311
        %v333 = vpop.f32.mrf.mxu0
        %v334 = vadd.f32 0.0, %v333
        %335 = vmatmul.f32.gmra.mxu0 %v314
        %v336 = vpop.f32.mrf.mxu0
        %v337 = vadd.f32 0.0, %v336
        %338 = vdwg.mxu0
        %v339 = vadd.f32 %v301, %v334
        %v340 = vadd.f32 %v302, %v337
        %341 = vst.msk [vmem:[#allocation2] sm:$0xff] %vm309, %v339
        %342 = vst.msk [vmem:[#allocation2 + $0x8] sm:$0xff] %vm309, %v340
        // Predicated region
        $region49: #{tpu_custom_call.1} parent=31 // pred_check
          %p343 = pneg %p294
        $region50: #{tpu_custom_call.1} parent=31 // pred_check_branch
          %345 = sbr.rel (%p343) target = $region52
        $region51: #{tpu_custom_call.1} parent=31 // pred_region
          %v346 = vld [vmem:[#allocation2] sm:$0xff]
          %v347 = vld [vmem:[#allocation2 + $0x8] sm:$0xff]
          %v348 = vld [vmem:[%s263] sm:$0x1]
          %v350 = vperm.slane %v348, 0
          %v352 = vadd.f32 %v346, %v350
          %v353 = vadd.f32 %v347, %v350
          %354 = vst.msk [vmem:[%s290] sm:$0xff] %vm309, %v352
          %355 = vst.msk [vmem:[%s290 + $0x8] sm:$0xff] %vm309, %v353
        $region52: #{tpu_custom_call.1} parent=31 // pred_fallthru
          _
        %s356 = sand.u32 %s145, 1
        %s357 = scalar_lea.sflag [#allocation5], %s356
        %s358 = sand.u32 %s145, 1
        %s359 = smul.addr %s358, 16
        %s360 = scalar_lea.vmem [#allocation9], %s359
        // Predicated region
        $region53: #{tpu_custom_call.1} parent=31 // pred_check
          %p361 = pneg %p155
        $region54: #{tpu_custom_call.1} parent=31 // pred_check_branch
          %363 = sbr.rel (%p361) target = $region56
        $region55: #{tpu_custom_call.1} parent=31 // pred_region
          %s364 = smul.u32 2, %s28
          %366 = vsyncadd %s357, 0
          %s367 = sadd.s32 %s29, %s364
          %s368 = smul.addr %s27, 2
          %s369 = sadd.s32 %s367, %s368
          %s370 = smul.addr %s369, 8
          %s371 = scalar_lea.hbm %s3, %s370
          %s372 = sshll.u32 %s360, 4
          %s373 = int_to_ptr.vmem [resolvable:$true] %s372
          %s374 = sshll.u32 %s371, 4
          %s375 = int_to_ptr.hbm [resolvable:$true] %s374
          %380 = dma.vmem_to_hbm [thread:$0]  %s373, 256, %s375, %s357, 128, 128, 8
        $region56: #{tpu_custom_call.1} parent=31 // pred_fallthru
          _
      $region32: #{tpu_custom_call.1} parent=5 // pred_fallthru
        _
      %p381 = scmp.le.s32.totalorder 2, %s16
      // Predicated region
      $region57: #{tpu_custom_call.1} parent=5 // pred_check
        %p382 = pneg %p381
      $region58: #{tpu_custom_call.1} parent=5 // pred_check_branch
        %384 = sbr.rel (%p382) target = $region60
      $region59: #{tpu_custom_call.1} parent=5 // pred_region
        %s385 = ssub.s32 %s16, 2
        // Predicated region
        $region61: #{tpu_custom_call.1} parent=59 // pred_check
          %p386 = pneg %p161
        $region62: #{tpu_custom_call.1} parent=59 // pred_check_branch
          %388 = sbr.rel (%p386) target = $region64
        $region63: #{tpu_custom_call.1} parent=59 // pred_region
          %s389 = sand.u32 %s146, 1
          %s390 = scalar_lea.sflag [#allocation5], %s389
          %s391 = sand.u32 %s146, 1
          %s392 = smul.addr %s391, 16
          %s393 = scalar_lea.vmem [#allocation9], %s392
          %395 = dma.done %s390, 256
        $region64: #{tpu_custom_call.1} parent=59 // pred_fallthru
          _
      $region60: #{tpu_custom_call.1} parent=5 // pred_fallthru
        _
    $region6: #{tpu_custom_call.1} parent=1 // loop_footer
      %s20 = sadd.s32 1, %s16
    $region7: #{tpu_custom_call.1} parent=1 // loop_footer_branch
      %15 = sbr.rel target = $region3
    $region8: #{tpu_custom_call.1} parent=1 // loop_exit
      _
    %396 = vsyncpa [#allocation4], 1
    %s397 = scalar_lea.sflag [#allocation4], 1
    %398 = vsyncpa %s397, 1
    %399 = vsyncpa [#allocation7], 1
    %s400 = scalar_lea.sflag [#allocation7], 1
    %401 = vsyncpa %s400, 1
    %402 = vsyncpa [#allocation5], 1
    %s403 = scalar_lea.sflag [#allocation5], 1
    %404 = vsyncpa %s403, 1

</llo_original>
